<compile_context>
chip_gen: v5e
topology: v5e:2x2
jax: 0.10.0
libtpu: 0.0.40
codegen_flags: <defaults>
</compile_context>

<pallas_src>
import jax
import jax.numpy as jnp
from jax import lax
from jax.experimental import pallas as pl
from jax.experimental.pallas import tpu as pltpu

_EPS = 1e-5  # nn.GroupNorm default eps


def _make_sa_kernel(hw):
    inv_hw = 1.0 / float(hw)

    def kernel(x_ref, p_ref, o_ref):
        # x_ref / o_ref: (TB, 2, TC, HW); p_ref: (TC, 4) = [cweight, cbias, gw', gb'] (f32)
        dt = x_ref.dtype
        p = p_ref[...]
        cw, cb = p[:, 0:1], p[:, 1:2]          # (TC, 1)
        gw, gb = p[:, 2:3], p[:, 3:4]          # folded spatial-branch affine

        # --- channel branch: global avg pool -> affine -> sigmoid gate ---
        x0 = x_ref[:, 0, :, :]                                          # (TB, TC, HW)
        mean0 = jnp.sum(x0.astype(jnp.float32), axis=-1, keepdims=True) * inv_hw
        g0 = (cw * mean0 + cb).astype(dt)                               # (TB, TC, 1)
        o_ref[:, 0, :, :] = (x0 * jax.nn.sigmoid(g0)).astype(o_ref.dtype)

        # --- spatial branch: GroupNorm + affine + gate folded into one FMA ---
        x1 = x_ref[:, 1, :, :]
        x1f = x1.astype(jnp.float32)
        m1 = jnp.sum(x1f, axis=-1, keepdims=True) * inv_hw
        m2 = jnp.sum(x1f * x1f, axis=-1, keepdims=True) * inv_hw
        var = jnp.maximum(m2 - m1 * m1, 0.0)
        a = gw * lax.rsqrt(var + _EPS)                                  # (TB, TC, 1) f32
        bconst = gb - a * m1
        g1 = a.astype(dt) * x1 + bconst.astype(dt)
        o_ref[:, 1, :, :] = (x1 * jax.nn.sigmoid(g1)).astype(o_ref.dtype)

    return kernel


def _vmem_plan():
    """Return (vmem_limit_bytes, per-x-block byte target), generation aware."""
    cap = None
    try:
        cap = int(pltpu.get_tpu_info().vmem_capacity_bytes)
    except Exception:
        cap = None
    if cap is not None and cap > 80 * 1024 * 1024:       # v5e/v6e: 128 MiB physical
        return 96 * 1024 * 1024, 8 * 1024 * 1024
    # v7x-class (64 MiB per TensorCore) or unknown chip: stay conservative.
    return 48 * 1024 * 1024, 6 * 1024 * 1024


def sa_layer_forward(x, params, groups=2):
    """x: (B, C, H, W). params = (cweight, cbias, sweight, sbias, gn_w, gn_b),
    each reshapeable to (CG,) with CG = C // (2 * groups)."""
    b, c, h, w = x.shape
    assert c % (2 * groups) == 0
    cg = c // (2 * groups)
    hw = h * w
    dtype = x.dtype
    itemsize = dtype.itemsize

    # Fold the two chained affines of the spatial branch and pack all params.
    cw, cb, sw, sb, gnw, gnb = [jnp.asarray(p, jnp.float32).reshape(cg) for p in params]
    packed = jnp.stack([cw, cb, sw * gnw, sw * gnb + sb], axis=1)        # (CG, 4) f32

    # Free view: channel ch = g*(2*CG) + half*CG + k  ->  (B, groups, 2, CG, HW),
    # so each half starts at its own tile boundary for any CG.
    xr = x.reshape(b, groups, 2, cg, hw)

    # ---- tiling / VMEM budget ----
    vmem_limit, x_block_target = _vmem_plan()
    sub = {4: 8, 2: 16, 1: 32}.get(itemsize, 8)          # sublane packing of dtype
    pad = lambda v, m: -(-v // m) * m
    row_elems = 2 * pad(cg, sub) * pad(hw, 128)          # one batch row (both halves), padded
    row_x_bytes = row_elems * itemsize
    # 2x double-buffered input + 2x double-buffered output + ~1.5 blocks of f32 temps
    row_all_bytes = 4 * row_elems * itemsize + 6 * row_elems
    tb = max(1, min(b,
                    x_block_target // max(row_x_bytes, 1),
                    (vmem_limit - (4 << 20)) // max(row_all_bytes, 1)))

    # Keep enough grid steps for DMA/compute overlap and both v7x TensorCores.
    min_steps = 8
    n_bt = lambda tb_: -(-b // tb_)
    while tb > 1 and n_bt(tb) * groups < min_steps:
        tb = (tb + 1) // 2
    ct, tc = 1, cg
    if n_bt(tb) * groups < min_steps and cg % sub == 0 and cg >= 2 * sub:
        max_ct = cg // sub
        want = -(-min_steps // (n_bt(tb) * groups))
        ct = max_ct
        for cand in range(want, max_ct + 1):
            if max_ct % cand == 0:
                ct = cand
                break
        tc = cg // ct
    grid = (n_bt(tb), ct, groups)

    in_spec_x = pl.BlockSpec((tb, None, 2, tc, hw), lambda i, ci, g: (i, g, 0, ci, 0))
    in_spec_p = pl.BlockSpec((tc, 4), lambda i, ci, g: (ci, 0))

    # channel_shuffle(., 2): final channel = 2*(half*CG + k) + g.  Viewing the output
    # as (B, 2, CG, groups*HW) and letting grid step (i, ci, g) write lane block g,
    # the shuffle becomes a pure output index_map and the final reshape is a free view.
    fuse_shuffle = (groups == 2) and (hw % 128 == 0)
    if fuse_shuffle:
        out_shape = jax.ShapeDtypeStruct((b, 2, cg, groups * hw), dtype)
        out_spec = pl.BlockSpec((tb, 2, tc, hw), lambda i, ci, g: (i, 0, ci, g))
    else:
        out_shape = jax.ShapeDtypeStruct((b, groups, 2, cg, hw), dtype)
        out_spec = pl.BlockSpec((tb, None, 2, tc, hw), lambda i, ci, g: (i, g, 0, ci, 0))

    out = pl.pallas_call(
        _make_sa_kernel(hw),
        out_shape=out_shape,
        grid_spec=pltpu.PrefetchScalarGridSpec(
            num_scalar_prefetch=0,
            grid=grid,
            in_specs=[in_spec_x, in_spec_p],
            out_specs=out_spec),
        compiler_params=pltpu.CompilerParams(
            dimension_semantics=("parallel", "parallel", "parallel"),
            vmem_limit_bytes=vmem_limit),
    )(xr, packed)

    out = out.reshape(b, c, h, w)
    if fuse_shuffle:
        return out                      # free view; channels already shuffled
    # TODO(synk): for groups != 2 or HW % 128 != 0 the channel_shuffle stays as an
    # XLA transpose (one extra HBM pass); an in-VMEM interleave variant would remove it.
    return out.reshape(b, 2, c // 2, h, w).transpose(0, 2, 1, 3, 4).reshape(b, c, h, w)


def sa_layer_ref(x, params, groups=2):
    """Pure-JAX reference mirroring the PyTorch forward exactly."""
    cw, cb, sw, sb, gw, gb = params
    b, c, h, w = x.shape
    cg = c // (2 * groups)
    rs = lambda p: p.reshape(1, cg, 1, 1)
    xr = x.reshape(b * groups, 2 * cg, h, w)
    x0, x1 = xr[:, :cg], xr[:, cg:]

    xn = jnp.mean(x0, axis=(2, 3), keepdims=True)
    xn = rs(cw) * xn + rs(cb)
    xn = x0 * jax.nn.sigmoid(xn)

    mean = jnp.mean(x1, axis=(2, 3), keepdims=True)
    var = jnp.mean(jnp.square(x1 - mean), axis=(2, 3), keepdims=True)
    xhat = (x1 - mean) / jnp.sqrt(var + _EPS)
    xs = rs(gw) * xhat + rs(gb)
    xs = rs(sw) * xs + rs(sb)
    xs = x1 * jax.nn.sigmoid(xs)

    out = jnp.concatenate([xn, xs], axis=1).reshape(b, c, h, w)
    out = out.reshape(b, 2, c // 2, h, w).transpose(0, 2, 1, 3, 4).reshape(b, c, h, w)
    return out


def _rand_params(key, cg):
    k1, k2, k3, k4, k5, k6 = jax.random.split(key, 6)
    cweight = 0.5 * jax.random.normal(k1, (cg,), jnp.float32)
    cbias   = 1.0 + 0.1 * jax.random.normal(k2, (cg,), jnp.float32)
    sweight = 0.5 * jax.random.normal(k3, (cg,), jnp.float32)
    sbias   = 1.0 + 0.1 * jax.random.normal(k4, (cg,), jnp.float32)
    gn_w    = 1.0 + 0.1 * jax.random.normal(k5, (cg,), jnp.float32)
    gn_b    = 0.1 * jax.random.normal(k6, (cg,), jnp.float32)
    return (cweight, cbias, sweight, sbias, gn_w, gn_b)


def _check(key, b, c, h, w, groups=2):
    kx, kp = jax.random.split(key)
    cg = c // (2 * groups)
    x = jax.random.normal(kx, (b, c, h, w), dtype=jnp.float32)
    params = _rand_params(kp, cg)
    out = jax.block_until_ready(sa_layer_forward(x, params, groups=groups))
    ref = sa_layer_ref(x, params, groups=groups)
    assert out.shape == (b, c, h, w)
    assert jnp.allclose(out, ref, atol=1e-5, rtol=1e-5), f"mismatch at shape {(b, c, h, w)}"


if __name__ == "__main__":
    root = jax.random.PRNGKey(0)
    k1, k2, k3 = jax.random.split(root, 3)
    # Primary shape: fused channel_shuffle path (HW % 128 == 0).
    _check(k1, b=2, c=8, h=16, w=16)
    # Odd batch -> cdiv grid with a partial last batch tile; HW % 128 != 0 fallback path.
    _check(k2, b=9, c=48, h=6, w=6)
    # Tiny batch, wide channels -> channel-tile grid axis engaged.
    _check(k3, b=2, c=128, h=8, w=8)
    print("KERNEL_OK")
</pallas_src>

<mosaic_0001>
module attributes {stable_mosaic.version = 11 : i64} {
  func.func @kernel(%arg0: i32, %arg1: i32, %arg2: i32, %arg3: memref<1x1x2x2x256xf32, #tpu.memory_space<vmem>>, %arg4: memref<2x4xf32, #tpu.memory_space<vmem>>, %arg5: memref<1x2x2x256xf32, #tpu.memory_space<vmem>>) attributes {dimension_semantics = [#tpu.dimension_semantics<parallel>, #tpu.dimension_semantics<parallel>, #tpu.dimension_semantics<parallel>], iteration_bounds = array<i64: 2, 1, 2>, scalar_prefetch = 0 : i64, scratch_operands = 0 : i64, tpu.core_type = #tpu.core_type<tc>, window_params = [{transform_indices = @transform_0, window_bounds = array<i64: 1, 1, 2, 2, 256>}, {transform_indices = @transform_1, window_bounds = array<i64: 2, 4>}, {transform_indices = @transform_2, window_bounds = array<i64: 1, 2, 2, 256>}]} {
    %c0 = arith.constant 0 : index
    %c0_0 = arith.constant 0 : index
    %0 = vector.load %arg4[%c0, %c0_0] : memref<2x4xf32, #tpu.memory_space<vmem>>, vector<2x4xf32>
    %1 = vector.extract_strided_slice %0 {offsets = [0, 0], sizes = [2, 1], strides = [1, 1]} : vector<2x4xf32> to vector<2x1xf32>
    %2 = vector.extract_strided_slice %0 {offsets = [0, 1], sizes = [2, 1], strides = [1, 1]} : vector<2x4xf32> to vector<2x1xf32>
    %3 = vector.extract_strided_slice %0 {offsets = [0, 2], sizes = [2, 1], strides = [1, 1]} : vector<2x4xf32> to vector<2x1xf32>
    %4 = vector.extract_strided_slice %0 {offsets = [0, 3], sizes = [2, 1], strides = [1, 1]} : vector<2x4xf32> to vector<2x1xf32>
    %c0_1 = arith.constant 0 : index
    %c0_2 = arith.constant 0 : index
    %c0_3 = arith.constant 0 : index
    %c0_4 = arith.constant 0 : index
    %c0_5 = arith.constant 0 : index
    %5 = vector.load %arg3[%c0_1, %c0_2, %c0_3, %c0_4, %c0_5] : memref<1x1x2x2x256xf32, #tpu.memory_space<vmem>>, vector<1x1x1x2x256xf32>
    %6 = vector.shape_cast %5 : vector<1x1x1x2x256xf32> to vector<1x2x256xf32>
    %cst = arith.constant dense<0.000000e+00> : vector<1x2xf32>
    %7 = vector.multi_reduction <add>, %6, %cst [2] : vector<1x2x256xf32> to vector<1x2xf32>
    %8 = vector.shape_cast %7 : vector<1x2xf32> to vector<1x2x1xf32>
    %cst_6 = arith.constant 3.906250e-03 : f32
    %9 = vector.broadcast %cst_6 : f32 to vector<1x2x1xf32>
    %10 = arith.mulf %8, %9 : vector<1x2x1xf32>
    %11 = vector.shape_cast %1 : vector<2x1xf32> to vector<1x2x1xf32>
    %12 = arith.mulf %11, %10 : vector<1x2x1xf32>
    %13 = vector.shape_cast %2 : vector<2x1xf32> to vector<1x2x1xf32>
    %14 = arith.addf %12, %13 : vector<1x2x1xf32>
    %15 = arith.negf %14 : vector<1x2x1xf32>
    %16 = math.exp %15 : vector<1x2x1xf32>
    %cst_7 = arith.constant 1.000000e+00 : f32
    %17 = vector.broadcast %cst_7 : f32 to vector<1x2x1xf32>
    %18 = arith.addf %17, %16 : vector<1x2x1xf32>
    %19 = arith.divf %17, %18 : vector<1x2x1xf32>
    %20 = vector.broadcast %19 : vector<1x2x1xf32> to vector<1x2x256xf32>
    %21 = arith.mulf %6, %20 : vector<1x2x256xf32>
    %c0_8 = arith.constant 0 : index
    %c0_9 = arith.constant 0 : index
    %c0_10 = arith.constant 0 : index
    %c0_11 = arith.constant 0 : index
    %22 = vector.load %arg5[%c0_8, %c0_9, %c0_10, %c0_11] : memref<1x2x2x256xf32, #tpu.memory_space<vmem>>, vector<1x1x2x256xf32>
    %23 = vector.shape_cast %22 : vector<1x1x2x256xf32> to vector<1x2x256xf32>
    %24 = vector.shape_cast %21 : vector<1x2x256xf32> to vector<1x1x2x256xf32>
    tpu.vector_store %arg5[%c0_8, %c0_9, %c0_10, %c0_11], %24 {strides = array<i32>} : memref<1x2x2x256xf32, #tpu.memory_space<vmem>>, vector<1x1x2x256xf32>,
    %c0_12 = arith.constant 0 : index
    %c0_13 = arith.constant 0 : index
    %c1 = arith.constant 1 : index
    %c0_14 = arith.constant 0 : index
    %c0_15 = arith.constant 0 : index
    %25 = vector.load %arg3[%c0_12, %c0_13, %c1, %c0_14, %c0_15] : memref<1x1x2x2x256xf32, #tpu.memory_space<vmem>>, vector<1x1x1x2x256xf32>
    %26 = vector.shape_cast %25 : vector<1x1x1x2x256xf32> to vector<1x2x256xf32>
    %cst_16 = arith.constant dense<0.000000e+00> : vector<1x2xf32>
    %27 = vector.multi_reduction <add>, %26, %cst_16 [2] : vector<1x2x256xf32> to vector<1x2xf32>
    %28 = vector.shape_cast %27 : vector<1x2xf32> to vector<1x2x1xf32>
    %cst_17 = arith.constant 3.906250e-03 : f32
    %29 = vector.broadcast %cst_17 : f32 to vector<1x2x1xf32>
    %30 = arith.mulf %28, %29 : vector<1x2x1xf32>
    %31 = arith.mulf %26, %26 : vector<1x2x256xf32>
    %cst_18 = arith.constant dense<0.000000e+00> : vector<1x2xf32>
    %32 = vector.multi_reduction <add>, %31, %cst_18 [2] : vector<1x2x256xf32> to vector<1x2xf32>
    %33 = vector.shape_cast %32 : vector<1x2xf32> to vector<1x2x1xf32>
    %cst_19 = arith.constant 3.906250e-03 : f32
    %34 = vector.broadcast %cst_19 : f32 to vector<1x2x1xf32>
    %35 = arith.mulf %33, %34 : vector<1x2x1xf32>
    %36 = arith.mulf %30, %30 : vector<1x2x1xf32>
    %37 = arith.subf %35, %36 : vector<1x2x1xf32>
    %cst_20 = arith.constant 0.000000e+00 : f32
    %38 = vector.broadcast %cst_20 : f32 to vector<1x2x1xf32>
    %39 = arith.maximumf %37, %38 : vector<1x2x1xf32>
    %cst_21 = arith.constant 9.99999974E-6 : f32
    %40 = vector.broadcast %cst_21 : f32 to vector<1x2x1xf32>
    %41 = arith.addf %39, %40 : vector<1x2x1xf32>
    %42 = math.rsqrt %41 : vector<1x2x1xf32>
    %43 = vector.shape_cast %3 : vector<2x1xf32> to vector<1x2x1xf32>
    %44 = arith.mulf %43, %42 : vector<1x2x1xf32>
    %45 = arith.mulf %44, %30 : vector<1x2x1xf32>
    %46 = vector.shape_cast %4 : vector<2x1xf32> to vector<1x2x1xf32>
    %47 = arith.subf %46, %45 : vector<1x2x1xf32>
    %48 = vector.broadcast %44 : vector<1x2x1xf32> to vector<1x2x256xf32>
    %49 = arith.mulf %48, %26 : vector<1x2x256xf32>
    %50 = vector.broadcast %47 : vector<1x2x1xf32> to vector<1x2x256xf32>
    %51 = arith.addf %49, %50 : vector<1x2x256xf32>
    %52 = arith.negf %51 : vector<1x2x256xf32>
    %53 = math.exp %52 : vector<1x2x256xf32>
    %cst_22 = arith.constant 1.000000e+00 : f32
    %54 = vector.broadcast %cst_22 : f32 to vector<1x2x256xf32>
    %55 = arith.addf %54, %53 : vector<1x2x256xf32>
    %56 = arith.divf %54, %55 : vector<1x2x256xf32>
    %57 = arith.mulf %26, %56 : vector<1x2x256xf32>
    %c0_23 = arith.constant 0 : index
    %c1_24 = arith.constant 1 : index
    %c0_25 = arith.constant 0 : index
    %c0_26 = arith.constant 0 : index
    %58 = vector.load %arg5[%c0_23, %c1_24, %c0_25, %c0_26] : memref<1x2x2x256xf32, #tpu.memory_space<vmem>>, vector<1x1x2x256xf32>
    %59 = vector.shape_cast %58 : vector<1x1x2x256xf32> to vector<1x2x256xf32>
    %60 = vector.shape_cast %57 : vector<1x2x256xf32> to vector<1x1x2x256xf32>
    tpu.vector_store %arg5[%c0_23, %c1_24, %c0_25, %c0_26], %60 {strides = array<i32>} : memref<1x2x2x256xf32, #tpu.memory_space<vmem>>, vector<1x1x2x256xf32>,
    return
  }
  func.func @transform_0(%arg0: i32, %arg1: i32, %arg2: i32) -> (i32, i32, i32, i32, i32) {
    %c0_i32 = arith.constant 0 : i32
    %c0_i32_0 = arith.constant 0 : i32
    %c0_i32_1 = arith.constant 0 : i32
    return %arg0, %arg2, %c0_i32, %arg1, %c0_i32_0 : i32, i32, i32, i32, i32
  }
  func.func @transform_1(%arg0: i32, %arg1: i32, %arg2: i32) -> (i32, i32) {
    %c0_i32 = arith.constant 0 : i32
    %c0_i32_0 = arith.constant 0 : i32
    return %arg1, %c0_i32 : i32, i32
  }
  func.func @transform_2(%arg0: i32, %arg1: i32, %arg2: i32) -> (i32, i32, i32, i32) {
    %c0_i32 = arith.constant 0 : i32
    %c0_i32_0 = arith.constant 0 : i32
    return %arg0, %c0_i32, %arg1, %arg2 : i32, i32, i32, i32
  }
}

</mosaic_0001>

<llo_original>
// kernel: tpu_custom_call.1
$region0: #{tpu_custom_call.1}
  #allocation0 [shape = 'u32[]', space=smem, size = 0x4, offset = 0x4, fixed_abs, tag = 'smem constant byte address 0x4 - core index']
  #allocation1 [shape = 'u32[72,128]{1,0:T(1,128)}', space=vmem, size = 0x9000, scoped, tag = 'internal scratch']
  %s0 = inlined_call_operand.hbm [shape: f32[2,2,2,2,256], index: 0, kind: input, shape index: {}]
  %s1 = inlined_call_operand.hbm [shape: f32[2,4], index: 1, kind: input, shape index: {}]
  %s2 = inlined_call_operand.hbm [shape: f32[2,2,2,512], index: 2, kind: output, shape index: {}]
  %s3 = sld [smem:[#allocation0]]
  $region49: #{tpu_custom_call.1} parent=0
    _
  %s5 = ssub.s32 1, %s3
  %s6 = scalar_select 0, %s5, %s3
  $region1: #{tpu_custom_call.1} parent=0
    #allocation2 [shape = 'u8[8192]{0}', space=vmem, size = 0x2000, scoped, tag = 'input window, operand 0']
    #allocation3 [shape = 's32[2]{0}', space=sflag, size = 0x8, scoped, tag = 'scoped memory for tpu_custom_call.1']
    #allocation4 [shape = 's32[2]{0}', space=sflag, size = 0x8, scoped, tag = 'scoped memory for tpu_custom_call.1']
    #allocation5 [shape = 'u8[1024]{0}', space=vmem, size = 0x400, scoped, tag = 'input window, operand 1, single buffered']
    #allocation6 [shape = 's32[1]{0}', space=sflag, size = 0x4, scoped, tag = 'scoped memory for tpu_custom_call.1']
    #allocation7 [shape = 'u8[8192]{0}', space=vmem, size = 0x2000, scoped, tag = 'output window, operand 0']
    %7 = vsyncpa [#allocation3], 0
    %s8 = scalar_lea.sflag [#allocation3], 1
    %9 = vsyncpa %s8, 0
    %10 = vsyncpa [#allocation6], 0
    %11 = vsyncpa [#allocation4], 0
    %s12 = scalar_lea.sflag [#allocation4], 1
    %13 = vsyncpa %s12, 0
    loop: start=0, step=1, limit=6
    $region2: #{tpu_custom_call.1} parent=1 // loop_pre_header
      _
    $region3: #{tpu_custom_call.1} parent=1 // loop_header
      %s15 = sphi 0, %s19
      %p16 = scmp.ge.s32.totalorder %s15, 6
      %s22 = sphi 0, %s41
      %s23 = sphi 0, %s37
      %s24 = sphi 0, %s33
      %s25 = sphi 0, %s22
      %s26 = sphi 0, %s23
      %s27 = sphi 0, %s24
      %s28 = sphi 0, %s25
      %s29 = sphi 0, %s26
      %s30 = sphi 0, %s27
      %s48 = sphi 0, %s50
      %s51 = sphi 0, %s48
      %s52 = sphi 0, %s51
      %s68 = sphi 0, %s52
      %s74 = sphi 0, %s76
      %s77 = sphi 0, %s74
      %s78 = sphi 0, %s77
      %s94 = sphi 0, %s78
      %s104 = sphi 0, %s106
      %s107 = sphi 0, %s104
      %s108 = sphi 0, %s107
      %s124 = sphi 0, %s108
    $region4: #{tpu_custom_call.1} parent=1 // loop_header_branch
      %18 = sbr.rel (%p16) target = $region8
    $region5: #{tpu_custom_call.1} parent=1 // loop_body
      %s20 = ssub.s32 %s15, 1
      %s21 = ssub.s32 %s15, 2
      %s31 = sadd.s32 1, %s24
      %p32 = scmp.ge.s32.totalorder %s31, 2
      %s33 = scalar_select %p32, 0, %s31
      %s34 = sadd.s32 1, %s23
      %s35 = scalar_select %p32, %s34, %s23
      %p36 = scmp.ge.s32.totalorder %s35, 1
      %s37 = scalar_select %p36, 0, %s35
      %s38 = sadd.s32 1, %s22
      %s39 = scalar_select %p36, %s38, %s22
      %p40 = scmp.ge.s32.totalorder %s39, 2
      %s41 = scalar_select %p40, 0, %s39
      %s42 = ssub.s32 %s22, %s41
      %s43 = ssub.s32 %s24, %s33
      %s44 = sor.u32 %s42, %s43
      %s45 = ssub.s32 %s23, %s37
      %s46 = sor.u32 %s44, %s45
      %p47 = scmp.eq.s32.totalorder %s46, 0
      %s49 = sadd.s32 %s48, 1
      %s50 = scalar_select %p47, %s48, %s49
      %p53 = pneg %p47
      %p54 = scmp.eq.s32.totalorder %s15, 3
      %p55 = por %p53, %p54
      %p56 = scmp.ne.s32.totalorder %s48, %s51
      %p57 = scmp.eq.s32.totalorder %s15, 0
      %p58 = por %p56, %p57
      %p59 = scmp.ne.s32.totalorder %s48, %s51
      %p60 = scmp.eq.s32.totalorder %s20, 3
      %p61 = por %p59, %p60
      %p62 = scmp.ne.s32.totalorder %s51, %s52
      %p63 = scmp.eq.s32.totalorder %s20, 0
      %p64 = por %p62, %p63
      %p65 = scmp.ne.s32.totalorder %s51, %s52
      %p66 = scmp.eq.s32.totalorder %s21, 3
      %p67 = por %p65, %p66
      %p69 = scmp.ne.s32.totalorder %s52, %s68
      %p70 = scmp.eq.s32.totalorder %s21, 0
      %p71 = por %p69, %p70
      %s72 = ssub.s32 %s23, %s37
      %p73 = scmp.eq.s32.totalorder %s72, 0
      %s75 = sadd.s32 %s74, 1
      %s76 = scalar_select %p73, %s74, %s75
      %p79 = pneg %p73
      %p80 = scmp.eq.s32.totalorder %s15, 3
      %p81 = por %p79, %p80
      %p82 = scmp.ne.s32.totalorder %s74, %s77
      %p83 = scmp.eq.s32.totalorder %s15, 0
      %p84 = por %p82, %p83
      %p85 = scmp.ne.s32.totalorder %s74, %s77
      %p86 = scmp.eq.s32.totalorder %s20, 3
      %p87 = por %p85, %p86
      %p88 = scmp.ne.s32.totalorder %s77, %s78
      %p89 = scmp.eq.s32.totalorder %s20, 0
      %p90 = por %p88, %p89
      %p91 = scmp.ne.s32.totalorder %s77, %s78
      %p92 = scmp.eq.s32.totalorder %s21, 3
      %p93 = por %p91, %p92
      %p95 = scmp.ne.s32.totalorder %s78, %s94
      %p96 = scmp.eq.s32.totalorder %s21, 0
      %p97 = por %p95, %p96
      %s98 = ssub.s32 %s22, %s41
      %s99 = ssub.s32 %s23, %s37
      %s100 = sor.u32 %s98, %s99
      %s101 = ssub.s32 %s24, %s33
      %s102 = sor.u32 %s100, %s101
      %p103 = scmp.eq.s32.totalorder %s102, 0
      %s105 = sadd.s32 %s104, 1
      %s106 = scalar_select %p103, %s104, %s105
      %p109 = pneg %p103
      %p110 = scmp.eq.s32.totalorder %s15, 3
      %p111 = por %p109, %p110
      %p112 = scmp.ne.s32.totalorder %s104, %s107
      %p113 = scmp.eq.s32.totalorder %s15, 0
      %p114 = por %p112, %p113
      %p115 = scmp.ne.s32.totalorder %s104, %s107
      %p116 = scmp.eq.s32.totalorder %s20, 3
      %p117 = por %p115, %p116
      %p118 = scmp.ne.s32.totalorder %s107, %s108
      %p119 = scmp.eq.s32.totalorder %s20, 0
      %p120 = por %p118, %p119
      %p121 = scmp.ne.s32.totalorder %s107, %s108
      %p122 = scmp.eq.s32.totalorder %s21, 3
      %p123 = por %p121, %p122
      %p125 = scmp.ne.s32.totalorder %s108, %s124
      %p126 = scmp.eq.s32.totalorder %s21, 0
      %p127 = por %p125, %p126
      %p128 = scmp.le.s32.totalorder 1, %s15
      %p129 = scmp.lt.s32.totalorder %s15, 5
      %p130 = pnand %p128, %p129
      %p131 = pneg %p130
      // Predicated region
      $region9: #{tpu_custom_call.1} parent=5 // pred_check
        _
      $region10: #{tpu_custom_call.1} parent=5 // pred_check_branch
        %133 = sbr.rel (%p130) target = $region12
      $region11: #{tpu_custom_call.1} parent=5 // pred_region
        %s134 = ssub.s32 %s15, 1
        // Predicated region
        $region13: #{tpu_custom_call.1} parent=11 // pred_check
          %p135 = pneg %p90
        $region14: #{tpu_custom_call.1} parent=11 // pred_check_branch
          %137 = sbr.rel (%p135) target = $region16
        $region15: #{tpu_custom_call.1} parent=11 // pred_region
          %139 = vsyncadd [#allocation6], 0
          %s140 = smul.addr %s26, 2
          %s141 = scalar_lea.hbm %s1, %s140
          %s143 = sshll.u32 %s141, 4
          %s144 = int_to_ptr.hbm [resolvable:$true] %s143
          %s145 = sshll.u32 [#allocation5], 4
          %s146 = int_to_ptr.vmem [resolvable:$true] %s145
          %148 = dma.hbm_to_vmem [thread:$0]  %s144, 32, %s146, [#allocation6]
        $region16: #{tpu_custom_call.1} parent=11 // pred_fallthru
          _
      $region12: #{tpu_custom_call.1} parent=5 // pred_fallthru
        _
      %p149 = scmp.lt.s32.totalorder %s15, 4
      // Predicated region
      $region17: #{tpu_custom_call.1} parent=5 // pred_check
        %p150 = pneg %p149
      $region18: #{tpu_custom_call.1} parent=5 // pred_check_branch
        %152 = sbr.rel (%p150) target = $region20
      $region19: #{tpu_custom_call.1} parent=5 // pred_region
        // Predicated region
        $region21: #{tpu_custom_call.1} parent=19 // pred_check
          %p153 = pneg %p58
        $region22: #{tpu_custom_call.1} parent=19 // pred_check_branch
          %155 = sbr.rel (%p153) target = $region24
        $region23: #{tpu_custom_call.1} parent=19 // pred_region
          %s156 = sand.u32 %s48, 1
          %s157 = scalar_lea.sflag [#allocation3], %s156
          %s158 = sand.u32 %s48, 1
          %s159 = smul.addr %s158, 8
          %s160 = scalar_lea.vmem [#allocation2], %s159
          %162 = vsyncadd %s157, 0
          %s163 = smul.addr %s23, 2
          %s164 = smul.addr %s24, 4
          %s165 = sadd.s32 %s163, %s164
          %s166 = smul.addr %s22, 8
          %s167 = sadd.s32 %s165, %s166
          %s168 = smul.addr %s167, 2
          %s169 = scalar_lea.hbm %s0, %s168
          %s170 = sshll.u32 %s169, 4
          %s171 = int_to_ptr.hbm [resolvable:$true] %s170
          %s172 = sshll.u32 %s160, 4
          %s173 = int_to_ptr.vmem [resolvable:$true] %s172
          %178 = dma.hbm_to_vmem [thread:$0]  %s171, 128, %s173, %s157, 64, 64, 4
        $region24: #{tpu_custom_call.1} parent=19 // pred_fallthru
          _
      $region20: #{tpu_custom_call.1} parent=5 // pred_fallthru
        _
      %p179 = scmp.le.s32.totalorder 1, %s15
      %p180 = scmp.lt.s32.totalorder %s15, 5
      %p181 = pnand %p179, %p180
      %p182 = pneg %p181
      // Predicated region
      $region25: #{tpu_custom_call.1} parent=5 // pred_check
        _
      $region26: #{tpu_custom_call.1} parent=5 // pred_check_branch
        %184 = sbr.rel (%p181) target = $region28
      $region27: #{tpu_custom_call.1} parent=5 // pred_region
        %s185 = ssub.s32 %s15, 1
        %s186 = sand.u32 %s51, 1
        %s187 = scalar_lea.sflag [#allocation3], %s186
        %s188 = sand.u32 %s51, 1
        %s189 = smul.addr %s188, 8
        %s190 = scalar_lea.vmem [#allocation2], %s189
        // Predicated region
        $region29: #{tpu_custom_call.1} parent=27 // pred_check
          %p191 = pneg %p64
        $region30: #{tpu_custom_call.1} parent=27 // pred_check_branch
          %193 = sbr.rel (%p191) target = $region32
        $region31: #{tpu_custom_call.1} parent=27 // pred_region
          %195 = dma.done %s187, 128
        $region32: #{tpu_custom_call.1} parent=27 // pred_fallthru
          _
        // Predicated region
        $region33: #{tpu_custom_call.1} parent=27 // pred_check
          %p196 = pneg %p90
        $region34: #{tpu_custom_call.1} parent=27 // pred_check_branch
          %198 = sbr.rel (%p196) target = $region36
        $region35: #{tpu_custom_call.1} parent=27 // pred_region
          %200 = dma.done [#allocation6], 32
        $region36: #{tpu_custom_call.1} parent=27 // pred_fallthru
          _
        %s201 = sand.u32 %s51, 1
        %s202 = scalar_lea.sflag [#allocation3], %s201
        %s203 = sand.u32 %s51, 1
        %s204 = smul.addr %s203, 8
        %s205 = scalar_lea.vmem [#allocation2], %s204
        %p206 = pneg %p64
        %p207 = pneg %p61
        %p208 = pneg %p90
        %p209 = pneg %p87
        %p210 = pneg %p120
        %p211 = pneg %p117
        %s212 = sand.u32 %s107, 1
        %s213 = scalar_lea.sflag [#allocation4], %s212
        %s214 = sand.u32 %s107, 1
        %s215 = smul.addr %s214, 8
        %s216 = scalar_lea.vmem [#allocation7], %s215
        %s217 = smul.u32 2, %s27
        %v218 = vld [vmem:[#allocation5] sm:$0x3]
        %v219 = vld [vmem:[%s190] sm:$0xf]
        %221 = vst [vmem:[#allocation1] ss:$4 sm:$0xff] %v219
        %v222 = vld.sshfl [vmem:[#allocation1] sm:$0xff pattern:$0x73625140]
        %v223 = vld.sshfl [vmem:[#allocation1 + $0x8] sm:$0xff pattern:$0x73625140]
        %vm226 = vcmask 1041408
        %v227 = vsel %vm226, %v222, 0.0
        %v228 = vsel %vm226, %v223, 0.0
        %v229 = vadd.f32 %v227, %v228
        %230 = vadd.xlane.f32.xlu0 %v229
        %v231 = vpop.xlane.xlu0 %230
        %v232 = vmul.f32 %v231, 0.00390625
        %v233 = vmul.f32 %v218, %v232
        %235 = vrot.lane.b32.xlu0 %v218, 127
        %v236 = vpop.permute.xlu0 %235
        %v238 = vadd.f32 %v233, %v236
        %v239 = vxor.u32 %v238, 2147483648
        %v240 = vmul.f32 %v239, 1.442695
        %v241 = vpow.pop %v240
        %v242 = vadd.f32 %v241, 1.0
        %v243 = vrcp.pop %v242
        %v244 = vmul.f32 %v242, %v243
        %v245 = vsub.f32 1.0, %v244
        %v246 = vmul.f32 %v243, %v245
        %v247 = vadd.f32 %v243, %v246
        %vm248 = vweird.f32 %v242
        %vm249 = vweird.f32 %v243
        %vm250 = vmor %vm248, %vm249
        %v251 = vsel %vm250, %v243, %v247
        %v252 = vand.u32 2147483647, %v242
        %vm253 = vcmp.eq.f32.partialorder %v252, 8.507059e+37
        %v254 = vand.u32 %v242, 2147483648
        %v255 = vor.u32 1.1754944e-38, %v254
        %v256 = vsel %vm253, %v255, %v251
        %v257 = vmul.f32 1.0, %v256
        %259 = vset.pattern.permute.xlu0 0
        %260 = vperm.xlu0 %259, %v257
        %v261 = vpop.permute.xlu0 %260
        %v263 = vunpack.c.l.s4 269488144
        %v264 = vunpack.c.0.s8 %v263
        %v265 = vperm.slane %v261, %v264
        %v267 = vmul.f32 %v219, %v265
        %268 = vst [vmem:[%s216] sm:$0xf] %v267
        %s269 = scalar_lea.vmem %s190, 4 [#allocation2]
        %v270 = vld [vmem:[%s269] sm:$0xf]
        %272 = vst [vmem:[#allocation1] ss:$4 sm:$0xff] %v270
        %v273 = vld.sshfl [vmem:[#allocation1] sm:$0xff pattern:$0x73625140]
        %v274 = vld.sshfl [vmem:[#allocation1 + $0x8] sm:$0xff pattern:$0x73625140]
        %v277 = vsel %vm226, %v273, 0.0
        %v278 = vsel %vm226, %v274, 0.0
        %v279 = vadd.f32 %v277, %v278
        %280 = vadd.xlane.f32.xlu0 %v279
        %v281 = vpop.xlane.xlu0 %280
        %v282 = vmul.f32 %v281, 0.00390625
        %v283 = vmul.f32 %v270, %v270
        %285 = vst [vmem:[#allocation1] ss:$4 sm:$0xff] %v283
        %v286 = vld.sshfl [vmem:[#allocation1] sm:$0xff pattern:$0x73625140]
        %v287 = vld.sshfl [vmem:[#allocation1 + $0x8] sm:$0xff pattern:$0x73625140]
        %v290 = vsel %vm226, %v286, 0.0
        %v291 = vsel %vm226, %v287, 0.0
        %v292 = vadd.f32 %v290, %v291
        %293 = vadd.xlane.f32.xlu0 %v292
        %v294 = vpop.xlane.xlu0 %293
        %v295 = vmul.f32 %v294, 0.00390625
        %v296 = vmul.f32 %v282, %v282
        %v297 = vsub.f32 %v295, %v296
        %v298 = vmax.f32 %v297, 0.0
        %v299 = vadd.f32 %v298, 1e-05
        %v300 = vrsqrt.pop %v299
        %v301 = vmul.f32 %v300, %v299
        %v302 = vmul.f32 %v301, %v300
        %v303 = vmul.f32 0.5, %v302
        %v304 = vsub.f32 1.5, %v303
        %v305 = vmul.f32 %v300, %v304
        %vm306 = vweird.f32 %v299
        %vm307 = vweird.f32 %v300
        %vm308 = vmor %vm306, %vm307
        %v309 = vsel %vm308, %v300, %v305
        %v310 = vmul.f32 %v218, %v309
        %v311 = vmul.f32 %v310, %v282
        %313 = vrot.lane.b32.xlu0 %v311, 1
        %v314 = vpop.permute.xlu0 %313
        %v316 = vsub.f32 %v218, %v314
        %318 = vset.pattern.permute.xlu0 2
        %319 = vperm.xlu0 %318, %v310
        %v320 = vpop.permute.xlu0 %319
        %322 = vst [vmem:[#allocation1] ss:$4 sm:$0xff] %v270
        %v323 = vld.sshfl [vmem:[#allocation1] sm:$0xff pattern:$0x73625140]
        %v324 = vld.sshfl [vmem:[#allocation1 + $0x8] sm:$0xff pattern:$0x73625140]
        %v327 = vmul.f32 %v320, %v323
        %v328 = vmul.f32 %v320, %v324
        %330 = vset.pattern.permute.xlu0 3
        %331 = vperm.xlu0 %330, %v316
        %v332 = vpop.permute.xlu0 %331
        %v334 = vadd.f32 %v327, %v332
        %v335 = vadd.f32 %v328, %v332
        %v336 = vxor.u32 %v334, 2147483648
        %v337 = vxor.u32 %v335, 2147483648
        %v338 = vmul.f32 %v336, 1.442695
        %v339 = vpow.pop %v338
        %v340 = vmul.f32 %v337, 1.442695
        %v341 = vpow.pop %v340
        %v342 = vadd.f32 %v339, 1.0
        %v343 = vadd.f32 %v341, 1.0
        %v344 = vrcp.pop %v342
        %v345 = vmul.f32 %v342, %v344
        %v346 = vsub.f32 1.0, %v345
        %v347 = vmul.f32 %v344, %v346
        %v348 = vadd.f32 %v344, %v347
        %vm349 = vweird.f32 %v342
        %vm350 = vweird.f32 %v344
        %vm351 = vmor %vm349, %vm350
        %v352 = vsel %vm351, %v344, %v348
        %v353 = vand.u32 2147483647, %v342
        %vm354 = vcmp.eq.f32.partialorder %v353, 8.507059e+37
        %v355 = vand.u32 %v342, 2147483648
        %v356 = vor.u32 1.1754944e-38, %v355
        %v357 = vsel %vm354, %v356, %v352
        %v358 = vmul.f32 1.0, %v357
        %v359 = vrcp.pop %v343
        %v360 = vmul.f32 %v343, %v359
        %v361 = vsub.f32 1.0, %v360
        %v362 = vmul.f32 %v359, %v361
        %v363 = vadd.f32 %v359, %v362
        %vm364 = vweird.f32 %v343
        %vm365 = vweird.f32 %v359
        %vm366 = vmor %vm364, %vm365
        %v367 = vsel %vm366, %v359, %v363
        %v368 = vand.u32 2147483647, %v343
        %vm369 = vcmp.eq.f32.partialorder %v368, 8.507059e+37
        %v370 = vand.u32 %v343, 2147483648
        %v371 = vor.u32 1.1754944e-38, %v370
        %v372 = vsel %vm369, %v371, %v367
        %v373 = vmul.f32 1.0, %v372
        %v376 = vrot.slane %v373, 6
        %v377 = vsel %vm226, %v358, %v376
        %v379 = vmul.f32 %v270, %v377
        %s380 = scalar_lea.vmem %s216, 4 [#allocation7]
        %381 = vst [vmem:[%s380] sm:$0xf] %v379
        %s382 = sand.u32 %s107, 1
        %s383 = scalar_lea.sflag [#allocation4], %s382
        %s384 = sand.u32 %s107, 1
        %s385 = smul.addr %s384, 8
        %s386 = scalar_lea.vmem [#allocation7], %s385
        // Predicated region
        $region37: #{tpu_custom_call.1} parent=27 // pred_check
          %p387 = pneg %p117
        $region38: #{tpu_custom_call.1} parent=27 // pred_check_branch
          %389 = sbr.rel (%p387) target = $region40
        $region39: #{tpu_custom_call.1} parent=27 // pred_region
          %s390 = smul.u32 2, %s27
          %392 = vsyncadd %s383, 0
          %s393 = smul.addr %s26, 4
          %s394 = sadd.s32 %s390, %s393
          %s395 = smul.addr %s25, 8
          %s396 = sadd.s32 %s394, %s395
          %s397 = smul.addr %s396, 2
          %s398 = scalar_lea.hbm %s2, %s397
          %s399 = sshll.u32 %s386, 4
          %s400 = int_to_ptr.vmem [resolvable:$true] %s399
          %s401 = sshll.u32 %s398, 4
          %s402 = int_to_ptr.hbm [resolvable:$true] %s401
          %407 = dma.vmem_to_hbm [thread:$0]  %s400, 128, %s402, %s383, 64, 128, 4
        $region40: #{tpu_custom_call.1} parent=27 // pred_fallthru
          _
      $region28: #{tpu_custom_call.1} parent=5 // pred_fallthru
        _
      %p408 = scmp.le.s32.totalorder 2, %s15
      // Predicated region
      $region41: #{tpu_custom_call.1} parent=5 // pred_check
        %p409 = pneg %p408
      $region42: #{tpu_custom_call.1} parent=5 // pred_check_branch
        %411 = sbr.rel (%p409) target = $region44
      $region43: #{tpu_custom_call.1} parent=5 // pred_region
        %s412 = ssub.s32 %s15, 2
        // Predicated region
        $region45: #{tpu_custom_call.1} parent=43 // pred_check
          %p413 = pneg %p123
        $region46: #{tpu_custom_call.1} parent=43 // pred_check_branch
          %415 = sbr.rel (%p413) target = $region48
        $region47: #{tpu_custom_call.1} parent=43 // pred_region
          %s416 = sand.u32 %s108, 1
          %s417 = scalar_lea.sflag [#allocation4], %s416
          %s418 = sand.u32 %s108, 1
          %s419 = smul.addr %s418, 8
          %s420 = scalar_lea.vmem [#allocation7], %s419
          %422 = dma.done %s417, 128
        $region48: #{tpu_custom_call.1} parent=43 // pred_fallthru
          _
      $region44: #{tpu_custom_call.1} parent=5 // pred_fallthru
        _
    $region6: #{tpu_custom_call.1} parent=1 // loop_footer
      %s19 = sadd.s32 1, %s15
    $region7: #{tpu_custom_call.1} parent=1 // loop_footer_branch
      %14 = sbr.rel target = $region3
    $region8: #{tpu_custom_call.1} parent=1 // loop_exit
      _
    %423 = vsyncpa [#allocation3], 1
    %s424 = scalar_lea.sflag [#allocation3], 1
    %425 = vsyncpa %s424, 1
    %426 = vsyncpa [#allocation6], 1
    %427 = vsyncpa [#allocation4], 1
    %s428 = scalar_lea.sflag [#allocation4], 1
    %429 = vsyncpa %s428, 1

</llo_original>
